<compile_context>
chip_gen: v7x
topology: tpu7x:2x2x1
jax: 0.10.0
libtpu: 0.0.40
codegen_flags: <defaults>
</compile_context>

<pallas_src>
import functools

import jax
import jax.numpy as jnp
from jax import lax
from jax.experimental import pallas as pl
from jax.experimental.pallas import tpu as pltpu


def _round_up(x, m):
    return (x + m - 1) // m * m


def _vmem_capacity_bytes():
    """Generation-aware VMEM capacity; conservative (v7x per-TC) fallback."""
    try:
        return int(pltpu.get_tpu_info().vmem_capacity_bytes)
    except Exception:
        return 64 * 1024 * 1024


def _pick_batch_tile(B, D, Kp, x_itemsize, vmem_budget):
    """Largest 8-aligned batch tile that fits the VMEM budget (<=1024 rows),
    capped so the grid has >= 2 steps (v7x 2-TC sharding of the batch axis)."""
    if B <= 8:
        return B                                   # full-extent block is legal
    per_row = 2 * D * x_itemsize + 2 * Kp * 4      # dbl-buffered x tile + out tile
    fixed = 2 * D * Kp * 4 + 2 * Kp * 4            # centers + ||c||^2 (worst case 2x)
    avail = vmem_budget - fixed
    tb = max(8, avail // per_row) if avail > per_row * 8 else 8
    tb = min(1024, tb, _round_up(pl.cdiv(B, 2), 8))
    return int(max(8, (tb // 8) * 8))


# ---------------------------------------------------------------------------
# Kernel: one batch tile of the full Clusterer forward.
#   x_ref  : (TB, D)  native dtype (f32/bf16), unpadded
#   ct_ref : (D, Kp)  f32  pre-transposed, class-padded centers
#   cc_ref : (1, Kp)  f32  ||c_k||^2 row
#   o_ref  : (TB, Kp) f32  padded soft assignments (lane-dense store)
# ---------------------------------------------------------------------------
def _clusterer_kernel(x_ref, ct_ref, cc_ref, o_ref, *, inv_alpha, power, n_classes):
    x = x_ref[...].astype(jnp.float32)             # bf16 upcast stays in-register
    ct = ct_ref[...]                               # (D, Kp), MXU-native RHS layout
    cc = cc_ref[...]                               # (1, Kp)

    # ||x - c||^2 = ||x||^2 + ||c||^2 - 2 x.c ; cross term on the MXU.
    # NOTE: the Gram expansion can lose precision vs the direct (x-c)^2 when
    # ||x||, ||c|| are huge and x is extremely close to a center; fine for
    # typical embedding magnitudes (and exact for the module's zero-init).
    xx = jnp.sum(x * x, axis=-1, keepdims=True)    # (TB, 1)
    xc = lax.dot_general(x, ct, (((1,), (0,)), ((), ())),
                         preferred_element_type=jnp.float32)   # (TB, Kp)
    norm_sq = jnp.maximum(xx + cc - 2.0 * xc, 0.0)

    base = 1.0 + norm_sq * inv_alpha
    if power == 1.0:                               # alpha == 1 fast path
        num = 1.0 / base
    else:                                          # general power via EUP exp/log
        num = jnp.exp((-power) * jnp.log(base))

    if n_classes < num.shape[-1]:                  # mask padded class columns
        col = lax.broadcasted_iota(jnp.int32, num.shape, 1)
        num = jnp.where(col < n_classes, num, 0.0)

    denom = jnp.sum(num, axis=-1, keepdims=True)   # (TB, 1)
    o_ref[...] = (num / denom).astype(o_ref.dtype)


# ---------------------------------------------------------------------------
# Wrapper: tiny center prep, one fused pallas_call, slice — all under one jit.
# ---------------------------------------------------------------------------
@functools.partial(jax.jit, static_argnames=("alpha", "single_buffer", "vmem_cap"))
def _clusterer_forward_impl(x, cluster_centers, *, alpha, single_buffer, vmem_cap):
    assert x.ndim == 2 and cluster_centers.ndim == 2
    B, D = x.shape
    K, D2 = cluster_centers.shape
    assert D == D2, (D, D2)

    if x.dtype not in (jnp.float32, jnp.bfloat16, jnp.float16):
        x = x.astype(jnp.float32)                  # keep f32/bf16 streams as-is

    Kp = _round_up(max(K, 128), 128)               # lane-dense output columns

    # One-time, tiny wrapper-side prep of the centers (no pass over x).
    cf = cluster_centers.astype(jnp.float32)
    ct_p = jnp.zeros((D, Kp), jnp.float32).at[:, :K].set(cf.T)          # (D, Kp)
    cc_p = jnp.zeros((1, Kp), jnp.float32).at[0, :K].set(jnp.sum(cf * cf, axis=-1))

    vmem_budget = int(vmem_cap * 0.70)
    TB = _pick_batch_tile(B, D, Kp, x.dtype.itemsize, vmem_budget)
    grid = (pl.cdiv(B, TB),)

    invariant_mode = dict(pipeline_mode=pl.Buffered(1)) if single_buffer else {}
    in_specs = [
        pl.BlockSpec((TB, D), lambda i: (i, 0)),                    # x batch tile
        pl.BlockSpec((D, Kp), lambda i: (0, 0), **invariant_mode),  # all centers
        pl.BlockSpec((1, Kp), lambda i: (0, 0), **invariant_mode),  # ||c||^2 row
    ]

    kernel = functools.partial(
        _clusterer_kernel,
        inv_alpha=1.0 / float(alpha),
        power=float(alpha + 1.0) / 2.0,
        n_classes=K,
    )

    out_p = pl.pallas_call(
        kernel,
        out_shape=jax.ShapeDtypeStruct((B, Kp), jnp.float32),
        grid_spec=pltpu.PrefetchScalarGridSpec(
            num_scalar_prefetch=0,
            grid=grid,
            in_specs=in_specs,
            out_specs=pl.BlockSpec((TB, Kp), lambda i: (i, 0)),
        ),
        compiler_params=pltpu.CompilerParams(
            dimension_semantics=("parallel",),     # batch axis -> both TCs on v7x
            vmem_limit_bytes=min(int(vmem_cap * 0.9), 100 * 1024 * 1024),
        ),
    )(x, ct_p, cc_p)

    # Drop padded class columns inside the same XLA program (no extra dispatch).
    return out_p[:, :K]


def clusterer_forward(x, cluster_centers, alpha=1.0):
    """x: (B, latent_dim), cluster_centers: (n_classes, latent_dim)."""
    vmem_cap = _vmem_capacity_bytes()
    try:
        return _clusterer_forward_impl(
            x, cluster_centers, alpha=float(alpha), single_buffer=True,
            vmem_cap=vmem_cap)
    except Exception:
        # Fallback if this JAX/Mosaic build rejects pipeline_mode=pl.Buffered(1).
        return _clusterer_forward_impl(
            x, cluster_centers, alpha=float(alpha), single_buffer=False,
            vmem_cap=vmem_cap)


# ---------------------------------------------------------------------------
# Pure-JAX reference (mirrors the PyTorch forward exactly).
# ---------------------------------------------------------------------------
def clusterer_forward_ref(x, cluster_centers, alpha=1.0):
    xf = x.astype(jnp.float32)
    cf = cluster_centers.astype(jnp.float32)
    diff = xf[:, None, :] - cf[None, :, :]
    norm_sq = jnp.sum(diff * diff, axis=2)
    num = 1.0 / (1.0 + norm_sq / alpha)
    power = float(alpha + 1.0) / 2.0
    num = num ** power
    return num / jnp.sum(num, axis=1, keepdims=True)


if __name__ == "__main__":
    B, latent_dim, n_classes, alpha = 2, 32, 10, 1.0

    key = jax.random.PRNGKey(0)
    kx, kc = jax.random.split(key)
    x = jax.random.normal(kx, (B, latent_dim), jnp.float32)
    # The torch module initializes cluster_centers to zeros (degenerate: output
    # is uniform 1/K).  Use random centers for a meaningful numerical check and
    # verify the zero-init behavior separately below.
    cluster_centers = jax.random.normal(kc, (n_classes, latent_dim), jnp.float32)

    out = jax.block_until_ready(clusterer_forward(x, cluster_centers, alpha=alpha))
    ref = clusterer_forward_ref(x, cluster_centers, alpha=alpha)
    assert out.shape == (B, n_classes), out.shape
    assert jnp.allclose(out, ref, atol=1e-4, rtol=1e-4), "mismatch vs reference"
    assert jnp.allclose(jnp.sum(out, axis=1), jnp.ones((B,)), atol=1e-5), "rows must sum to 1"

    # Module's actual init: zero centers -> uniform soft assignment 1/K.
    out0 = jax.block_until_ready(
        clusterer_forward(x, jnp.zeros((n_classes, latent_dim), jnp.float32), alpha=alpha))
    assert jnp.allclose(out0, jnp.full((B, n_classes), 1.0 / n_classes), atol=1e-5)

    # Larger, non-divisible batch exercises the tiled grid + partial last block.
    xb = jax.random.normal(kx, (37, latent_dim), jnp.float32)
    outb = jax.block_until_ready(clusterer_forward(xb, cluster_centers, alpha=alpha))
    refb = clusterer_forward_ref(xb, cluster_centers, alpha=alpha)
    assert jnp.allclose(outb, refb, atol=1e-4, rtol=1e-4), "tiled batch mismatch"

    print("KERNEL_OK")
</pallas_src>

<mosaic_0001>
module attributes {stable_mosaic.version = 11 : i64} {
  func.func @_clusterer_kernel(%arg0: i32, %arg1: memref<2x32xf32, #tpu.memory_space<vmem>>, %arg2: memref<32x128xf32, #tpu.memory_space<vmem>>, %arg3: memref<1x128xf32, #tpu.memory_space<vmem>>, %arg4: memref<2x128xf32, #tpu.memory_space<vmem>>) attributes {dimension_semantics = [#tpu.dimension_semantics<parallel>], iteration_bounds = array<i64: 1>, scalar_prefetch = 0 : i64, scratch_operands = 0 : i64, tpu.core_type = #tpu.core_type<tc>, window_params = [{transform_indices = @transform_0, window_bounds = array<i64: 2, 32>}, {pipeline_mode = #tpu.pipeline_mode<synchronous>, transform_indices = @transform_1, window_bounds = array<i64: 32, 128>}, {pipeline_mode = #tpu.pipeline_mode<synchronous>, transform_indices = @transform_2, window_bounds = array<i64: 1, 128>}, {transform_indices = @transform_3, window_bounds = array<i64: 2, 128>}]} {
    %c0 = arith.constant 0 : index
    %c0_0 = arith.constant 0 : index
    %0 = vector.load %arg1[%c0, %c0_0] : memref<2x32xf32, #tpu.memory_space<vmem>>, vector<2x32xf32>
    %c0_1 = arith.constant 0 : index
    %c0_2 = arith.constant 0 : index
    %1 = vector.load %arg2[%c0_1, %c0_2] : memref<32x128xf32, #tpu.memory_space<vmem>>, vector<32x128xf32>
    %c0_3 = arith.constant 0 : index
    %c0_4 = arith.constant 0 : index
    %2 = vector.load %arg3[%c0_3, %c0_4] : memref<1x128xf32, #tpu.memory_space<vmem>>, vector<1x128xf32>
    %3 = arith.mulf %0, %0 : vector<2x32xf32>
    %cst = arith.constant dense<0.000000e+00> : vector<2xf32>
    %4 = vector.multi_reduction <add>, %3, %cst [1] : vector<2x32xf32> to vector<2xf32>
    %5 = vector.shape_cast %4 : vector<2xf32> to vector<2x1xf32>
    %cst_5 = arith.constant dense<0.000000e+00> : vector<2x128xf32>
    %6 = tpu.matmul %0, %1, %cst_5 {dimension_numbers = #tpu.dot_dimension_numbers<[1], [0], [0], [1], [0, 0, 1, 1], [], []>} : vector<2x32xf32>, vector<32x128xf32>, vector<2x128xf32> -> vector<2x128xf32>
    %7 = vector.broadcast %5 : vector<2x1xf32> to vector<2x128xf32>
    %8 = vector.broadcast %2 : vector<1x128xf32> to vector<2x128xf32>
    %9 = arith.addf %7, %8 : vector<2x128xf32>
    %cst_6 = arith.constant 2.000000e+00 : f32
    %10 = vector.broadcast %cst_6 : f32 to vector<2x128xf32>
    %11 = arith.mulf %10, %6 : vector<2x128xf32>
    %12 = arith.subf %9, %11 : vector<2x128xf32>
    %cst_7 = arith.constant 0.000000e+00 : f32
    %13 = vector.broadcast %cst_7 : f32 to vector<2x128xf32>
    %14 = arith.maximumf %12, %13 : vector<2x128xf32>
    %cst_8 = arith.constant 1.000000e+00 : f32
    %15 = vector.broadcast %cst_8 : f32 to vector<2x128xf32>
    %16 = arith.mulf %14, %15 : vector<2x128xf32>
    %cst_9 = arith.constant 1.000000e+00 : f32
    %17 = vector.broadcast %cst_9 : f32 to vector<2x128xf32>
    %18 = arith.addf %17, %16 : vector<2x128xf32>
    %cst_10 = arith.constant 1.000000e+00 : f32
    %19 = vector.broadcast %cst_10 : f32 to vector<2x128xf32>
    %20 = arith.divf %19, %18 : vector<2x128xf32>
    %21 = tpu.iota {dimensions = array<i32: 1>} : vector<2x128xi32>
    %c10_i32 = arith.constant 10 : i32
    %22 = vector.broadcast %c10_i32 : i32 to vector<2x128xi32>
    %23 = arith.cmpi slt, %21, %22 : vector<2x128xi32>
    %cst_11 = arith.constant 0.000000e+00 : f32
    %24 = vector.broadcast %cst_11 : f32 to vector<2x128xf32>
    %25 = arith.select %23, %20, %24 : vector<2x128xi1>, vector<2x128xf32>
    %cst_12 = arith.constant dense<0.000000e+00> : vector<2xf32>
    %26 = vector.multi_reduction <add>, %25, %cst_12 [1] : vector<2x128xf32> to vector<2xf32>
    %27 = vector.shape_cast %26 : vector<2xf32> to vector<2x1xf32>
    %28 = vector.broadcast %27 : vector<2x1xf32> to vector<2x128xf32>
    %29 = arith.divf %25, %28 : vector<2x128xf32>
    %c0_13 = arith.constant 0 : index
    %c0_14 = arith.constant 0 : index
    %30 = vector.load %arg4[%c0_13, %c0_14] : memref<2x128xf32, #tpu.memory_space<vmem>>, vector<2x128xf32>
    tpu.vector_store %arg4[%c0_13, %c0_14], %29 {strides = array<i32>} : memref<2x128xf32, #tpu.memory_space<vmem>>, vector<2x128xf32>,
    return
  }
  func.func @transform_0(%arg0: i32) -> (i32, i32) {
    %c0_i32 = arith.constant 0 : i32
    %c0_i32_0 = arith.constant 0 : i32
    return %arg0, %c0_i32 : i32, i32
  }
  func.func @transform_1(%arg0: i32) -> (i32, i32) {
    %c0_i32 = arith.constant 0 : i32
    %c0_i32_0 = arith.constant 0 : i32
    %c0_i32_1 = arith.constant 0 : i32
    return %c0_i32, %c0_i32_0 : i32, i32
  }
  func.func @transform_2(%arg0: i32) -> (i32, i32) {
    %c0_i32 = arith.constant 0 : i32
    %c0_i32_0 = arith.constant 0 : i32
    %c0_i32_1 = arith.constant 0 : i32
    return %c0_i32, %c0_i32_0 : i32, i32
  }
  func.func @transform_3(%arg0: i32) -> (i32, i32) {
    %c0_i32 = arith.constant 0 : i32
    %c0_i32_0 = arith.constant 0 : i32
    return %arg0, %c0_i32 : i32, i32
  }
}

module attributes {stable_mosaic.version = 11 : i64} {
  func.func @_clusterer_kernel(%arg0: i32, %arg1: memref<2x32xf32, #tpu.memory_space<vmem>>, %arg2: memref<32x128xf32, #tpu.memory_space<vmem>>, %arg3: memref<1x128xf32, #tpu.memory_space<vmem>>, %arg4: memref<2x128xf32, #tpu.memory_space<vmem>>) attributes {dimension_semantics = [#tpu.dimension_semantics<parallel>], iteration_bounds = array<i64: 1>, scalar_prefetch = 0 : i64, scratch_operands = 0 : i64, tpu.core_type = #tpu.core_type<tc>, window_params = [{transform_indices = @transform_0, window_bounds = array<i64: 2, 32>}, {pipeline_mode = #tpu.pipeline_mode<synchronous>, transform_indices = @transform_1, window_bounds = array<i64: 32, 128>}, {pipeline_mode = #tpu.pipeline_mode<synchronous>, transform_indices = @transform_2, window_bounds = array<i64: 1, 128>}, {transform_indices = @transform_3, window_bounds = array<i64: 2, 128>}]} {
    %c0 = arith.constant 0 : index
    %c0_0 = arith.constant 0 : index
    %0 = vector.load %arg1[%c0, %c0_0] : memref<2x32xf32, #tpu.memory_space<vmem>>, vector<2x32xf32>
    %c0_1 = arith.constant 0 : index
    %c0_2 = arith.constant 0 : index
    %1 = vector.load %arg2[%c0_1, %c0_2] : memref<32x128xf32, #tpu.memory_space<vmem>>, vector<32x128xf32>
    %c0_3 = arith.constant 0 : index
    %c0_4 = arith.constant 0 : index
    %2 = vector.load %arg3[%c0_3, %c0_4] : memref<1x128xf32, #tpu.memory_space<vmem>>, vector<1x128xf32>
    %3 = arith.mulf %0, %0 : vector<2x32xf32>
    %cst = arith.constant dense<0.000000e+00> : vector<2xf32>
    %4 = vector.multi_reduction <add>, %3, %cst [1] : vector<2x32xf32> to vector<2xf32>
    %5 = vector.shape_cast %4 : vector<2xf32> to vector<2x1xf32>
    %cst_5 = arith.constant dense<0.000000e+00> : vector<2x128xf32>
    %6 = tpu.matmul %0, %1, %cst_5 {dimension_numbers = #tpu.dot_dimension_numbers<[1], [0], [0], [1], [0, 0, 1, 1], [], []>} : vector<2x32xf32>, vector<32x128xf32>, vector<2x128xf32> -> vector<2x128xf32>
    %7 = vector.broadcast %5 : vector<2x1xf32> to vector<2x128xf32>
    %8 = vector.broadcast %2 : vector<1x128xf32> to vector<2x128xf32>
    %9 = arith.addf %7, %8 : vector<2x128xf32>
    %cst_6 = arith.constant 2.000000e+00 : f32
    %10 = vector.broadcast %cst_6 : f32 to vector<2x128xf32>
    %11 = arith.mulf %10, %6 : vector<2x128xf32>
    %12 = arith.subf %9, %11 : vector<2x128xf32>
    %cst_7 = arith.constant 0.000000e+00 : f32
    %13 = vector.broadcast %cst_7 : f32 to vector<2x128xf32>
    %14 = arith.maximumf %12, %13 : vector<2x128xf32>
    %cst_8 = arith.constant 1.000000e+00 : f32
    %15 = vector.broadcast %cst_8 : f32 to vector<2x128xf32>
    %16 = arith.mulf %14, %15 : vector<2x128xf32>
    %cst_9 = arith.constant 1.000000e+00 : f32
    %17 = vector.broadcast %cst_9 : f32 to vector<2x128xf32>
    %18 = arith.addf %17, %16 : vector<2x128xf32>
    %cst_10 = arith.constant 1.000000e+00 : f32
    %19 = vector.broadcast %cst_10 : f32 to vector<2x128xf32>
    %20 = arith.divf %19, %18 : vector<2x128xf32>
    %21 = tpu.iota {dimensions = array<i32: 1>} : vector<2x128xi32>
    %c10_i32 = arith.constant 10 : i32
    %22 = vector.broadcast %c10_i32 : i32 to vector<2x128xi32>
    %23 = arith.cmpi slt, %21, %22 : vector<2x128xi32>
    %cst_11 = arith.constant 0.000000e+00 : f32
    %24 = vector.broadcast %cst_11 : f32 to vector<2x128xf32>
    %25 = arith.select %23, %20, %24 : vector<2x128xi1>, vector<2x128xf32>
    %cst_12 = arith.constant dense<0.000000e+00> : vector<2xf32>
    %26 = vector.multi_reduction <add>, %25, %cst_12 [1] : vector<2x128xf32> to vector<2xf32>
    %27 = vector.shape_cast %26 : vector<2xf32> to vector<2x1xf32>
    %28 = vector.broadcast %27 : vector<2x1xf32> to vector<2x128xf32>
    %29 = arith.divf %25, %28 : vector<2x128xf32>
    %c0_13 = arith.constant 0 : index
    %c0_14 = arith.constant 0 : index
    %30 = vector.load %arg4[%c0_13, %c0_14] : memref<2x128xf32, #tpu.memory_space<vmem>>, vector<2x128xf32>
    tpu.vector_store %arg4[%c0_13, %c0_14], %29 {strides = array<i32>} : memref<2x128xf32, #tpu.memory_space<vmem>>, vector<2x128xf32>,
    return
  }
  func.func @transform_0(%arg0: i32) -> (i32, i32) {
    %c0_i32 = arith.constant 0 : i32
    %c0_i32_0 = arith.constant 0 : i32
    return %arg0, %c0_i32 : i32, i32
  }
  func.func @transform_1(%arg0: i32) -> (i32, i32) {
    %c0_i32 = arith.constant 0 : i32
    %c0_i32_0 = arith.constant 0 : i32
    %c0_i32_1 = arith.constant 0 : i32
    return %c0_i32, %c0_i32_0 : i32, i32
  }
  func.func @transform_2(%arg0: i32) -> (i32, i32) {
    %c0_i32 = arith.constant 0 : i32
    %c0_i32_0 = arith.constant 0 : i32
    %c0_i32_1 = arith.constant 0 : i32
    return %c0_i32, %c0_i32_0 : i32, i32
  }
  func.func @transform_3(%arg0: i32) -> (i32, i32) {
    %c0_i32 = arith.constant 0 : i32
    %c0_i32_0 = arith.constant 0 : i32
    return %arg0, %c0_i32 : i32, i32
  }
}

</mosaic_0001>

<llo_original>
// kernel: _clusterer_forward_impl.1
$region0: #{_clusterer_forward_impl.1}
  #allocation0 [shape = 'u32[]', space=smem, size = 0x4, offset = 0x4, fixed_abs, tag = 'smem constant byte address 0x4 - core index']
  #allocation1 [shape = 'u32[144,128]{1,0:T(1,128)}', space=vmem, size = 0x12000, scoped, tag = 'internal scratch']
  %s0 = inlined_call_operand.vmem [shape: f32[2,32], index: 0, kind: input, shape index: {}]
  %s1 = inlined_call_operand.vmem [shape: f32[32,128], index: 1, kind: input, shape index: {}]
  %s2 = inlined_call_operand.vmem [shape: f32[1,128], index: 2, kind: input, shape index: {}]
  %s3 = inlined_call_operand.hbm [shape: f32[2,128], index: 3, kind: output, shape index: {}]
  %s4 = sld [smem:[#allocation0]]
  $region22: #{_clusterer_forward_impl.1} parent=0
    _
  %s6 = ssub.s32 1, %s4
  %s7 = scalar_select 0, %s6, %s4
  $region1: #{_clusterer_forward_impl.1} parent=0
    #allocation2 [shape = 'u8[1024]{0}', space=vmem, size = 0x400, scoped, tag = 'output window, operand 0, single buffered']
    #allocation3 [shape = 's32[1]{0}', space=sflag, size = 0x4, scoped, tag = 'scoped memory for _clusterer_forward_impl.1']
    %8 = vsyncpa [#allocation3], 0
    // Predicated region
    $region2: #{_clusterer_forward_impl.1} parent=1 // pred_check
      _
    $region3: #{_clusterer_forward_impl.1} parent=1 // pred_check_branch
      %10 = sbr.rel (0) target = $region5
    $region4: #{_clusterer_forward_impl.1} parent=1 // pred_region
      _
    $region5: #{_clusterer_forward_impl.1} parent=1 // pred_fallthru
      _
    // Predicated region
    $region6: #{_clusterer_forward_impl.1} parent=1 // pred_check
      _
    $region7: #{_clusterer_forward_impl.1} parent=1 // pred_check_branch
      %12 = sbr.rel (0) target = $region9
    $region8: #{_clusterer_forward_impl.1} parent=1 // pred_region
      _
    $region9: #{_clusterer_forward_impl.1} parent=1 // pred_fallthru
      _
    // Predicated region
    $region10: #{_clusterer_forward_impl.1} parent=1 // pred_check
      _
    $region11: #{_clusterer_forward_impl.1} parent=1 // pred_check_branch
      %14 = sbr.rel (0) target = $region13
    $region12: #{_clusterer_forward_impl.1} parent=1 // pred_region
      _
    $region13: #{_clusterer_forward_impl.1} parent=1 // pred_fallthru
      _
    %v15 = vld [vmem:[%s0] sm:$0x3]
    %v16 = vld [vmem:[%s1] sm:$0xff]
    %v17 = vld [vmem:[%s1 + $0x8] sm:$0xff]
    %v18 = vld [vmem:[%s1 + $0x10] sm:$0xff]
    %v19 = vld [vmem:[%s1 + $0x18] sm:$0xff]
    %v20 = vld [vmem:[%s2] sm:$0x1]
    %v21 = vmul.f32 %v15, %v15
    %vm22 = vcmask 254976
    %v23 = vsel %vm22, %v21, 0.0
    %24 = vadd.xlane.f32.xlu0 %v23
    %v25 = vpop.xlane.xlu0 %24
    %vm26 = vcmask 261120
    %v28 = vsel %vm26, %v15, 0
    %30 = vmatprep.subr.mxu0 0.0
    %31 = vmatpush1.msra.mxu0 %v16
    %32 = vmatprep.subr.mxu0 0.0
    %33 = vmatpush1.msra.mxu0 %v17
    %34 = vmatprep.subr.mxu0 0.0
    %35 = vmatpush1.msra.mxu0 %v18
    %36 = vmatprep.subr.mxu0 0.0
    %37 = vmatpush1.msra.mxu0 %v19
    %38 = vmatprep.subr.mxu0 0.0
    %39 = vmatpush1.msra.mxu0 0.0
    %40 = vmatprep.subr.mxu0 0.0
    %41 = vmatpush1.msra.mxu0 0.0
    %42 = vmatprep.subr.mxu0 0.0
    %43 = vmatpush1.msra.mxu0 0.0
    %44 = vmatprep.subr.mxu0 0.0
    %45 = vmatpush1.msra.mxu0 0.0
    %46 = vmatprep.subr.mxu0 0.0
    %47 = vmatpush1.msra.mxu0 0.0
    %48 = vmatprep.subr.mxu0 0.0
    %49 = vmatpush1.msra.mxu0 0.0
    %50 = vmatprep.subr.mxu0 0.0
    %51 = vmatpush1.msra.mxu0 0.0
    %52 = vmatprep.subr.mxu0 0.0
    %53 = vmatpush1.msra.mxu0 0.0
    %54 = vmatprep.subr.mxu0 0.0
    %55 = vmatpush1.msra.mxu0 0.0
    %56 = vmatprep.subr.mxu0 0.0
    %57 = vmatpush1.msra.mxu0 0.0
    %58 = vmatprep.subr.mxu0 0.0
    %59 = vmatpush1.msra.mxu0 0.0
    %60 = vmatprep.subr.mxu0 0.0
    %61 = vmatpush1.msra.mxu0 0.0
    %62 = vmatprep.subr.mxu0 0.0
    %63 = vmatpush1.msra.mxu0 0.0
    %64 = vmatprep.subr.mxu0 0.0
    %65 = vmatpush1.msra.mxu0 0.0
    %66 = vmatprep.subr.mxu0 0.0
    %67 = vmatpush1.msra.mxu0 0.0
    %68 = vmatprep.subr.mxu0 0.0
    %69 = vmatpush1.msra.mxu0 0.0
    %70 = vmatprep.subr.mxu0 0.0
    %71 = vmatpush1.msra.mxu0 0.0
    %72 = vmatprep.subr.mxu0 0.0
    %73 = vmatpush1.msra.mxu0 0.0
    %74 = vmatprep.subr.mxu0 0.0
    %75 = vmatpush1.msra.mxu0 0.0
    %76 = vmatprep.subr.mxu0 0.0
    %77 = vmatpush1.msra.mxu0 0.0
    %78 = vmatprep.subr.mxu0 0.0
    %79 = vmatpush1.msra.mxu0 0.0
    %80 = vmatprep.subr.mxu0 0.0
    %81 = vmatpush1.msra.mxu0 0.0
    %82 = vmatprep.subr.mxu0 0.0
    %83 = vmatpush1.msra.mxu0 0.0
    %84 = vmatprep.subr.mxu0 0.0
    %85 = vmatpush1.msra.mxu0 0.0
    %86 = vmatprep.subr.mxu0 0.0
    %87 = vmatpush1.msra.mxu0 0.0
    %88 = vmatprep.subr.mxu0 0.0
    %89 = vmatpush1.msra.mxu0 0.0
    %90 = vmatprep.subr.mxu0 0.0
    %91 = vmatpush1.msra.mxu0 0.0
    %92 = vmatprep.subr.mxu0 0.0
    %93 = vmatpush1.msra.mxu0 0.0
    %94 = vmatprep.mubr.f32.mxu0 0.0
    %95 = vmatmul.mubr.f32.gmra.mrb[0].mxu0 %v28
    %v96 = vpop.f32.mrb[0].mxu0
    %v97 = vadd.f32 0.0, %v96
    %v98 = vpop.f32.mrb[0].mxu0
    %99 = vdwg.mxu0
    %v101 = vlaneseq
    %v102 = vshrl.u32 %v101, 7
    %v103 = vsub.s32 0, %v102
    %v104 = vrot.slane %v20, %v103
    %v106 = vadd.f32 %v25, %v104
    %v107 = vmul.f32 %v97, 2.0
    %v108 = vsub.f32 %v106, %v107
    %v109 = vmax.f32 %v108, 0.0
    %v110 = vadd.f32 %v109, 1.0
    %v111 = vrcp.pop %v110
    %v112 = vmul.f32 1.0, %v111
    %v113 = vlaneseq
    %v114 = vand.u32 %v113, 127
    %vm115 = vcmp.lt.s32.totalorder %v114, 10
    %v116 = vsel %vm115, %v112, 0.0
    %vm117 = vcmask 1041408
    %v118 = vsel %vm117, %v116, 0.0
    %119 = vadd.xlane.f32.xlu0 %v118
    %v120 = vpop.xlane.xlu0 %119
    %v121 = vrcp.pop %v120
    %v122 = vmul.f32 %v116, %v121
    %123 = vst [vmem:[#allocation2] sm:$0x3] %v122
    // Predicated region
    $region14: #{_clusterer_forward_impl.1} parent=1 // pred_check
      _
    $region15: #{_clusterer_forward_impl.1} parent=1 // pred_check_branch
      %125 = sbr.rel (0) target = $region17
    $region16: #{_clusterer_forward_impl.1} parent=1 // pred_region
      %s127 = ssub.s32 32, 32
      %128 = vsyncadd [#allocation3], %s127
      %s130 = sshll.u32 [#allocation2], 4
      %s131 = int_to_ptr.vmem [resolvable:$true] %s130
      %133 = dma.vmem_to_hbm [thread:$0]  %s131, 32, %s3, [#allocation3]
    $region17: #{_clusterer_forward_impl.1} parent=1 // pred_fallthru
      _
    // Predicated region
    $region18: #{_clusterer_forward_impl.1} parent=1 // pred_check
      _
    $region19: #{_clusterer_forward_impl.1} parent=1 // pred_check_branch
      %135 = sbr.rel (0) target = $region21
    $region20: #{_clusterer_forward_impl.1} parent=1 // pred_region
      %136 = dma.done [#allocation3], 32
    $region21: #{_clusterer_forward_impl.1} parent=1 // pred_fallthru
      _
    %137 = vsyncpa [#allocation3], 1

// kernel: _clusterer_forward_impl.1
$region0: #{_clusterer_forward_impl.1}
  #allocation0 [shape = 'u32[]', space=smem, size = 0x4, offset = 0x4, fixed_abs, tag = 'smem constant byte address 0x4 - core index']
  #allocation1 [shape = 'u32[144,128]{1,0:T(1,128)}', space=vmem, size = 0x12000, scoped, tag = 'internal scratch']
  %s0 = inlined_call_operand.vmem [shape: f32[2,32], index: 0, kind: input, shape index: {}]
  %s1 = inlined_call_operand.vmem [shape: f32[32,128], index: 1, kind: input, shape index: {}]
  %s2 = inlined_call_operand.vmem [shape: f32[1,128], index: 2, kind: input, shape index: {}]
  %s3 = inlined_call_operand.hbm [shape: f32[2,128], index: 3, kind: output, shape index: {}]
  %s4 = sld [smem:[#allocation0]]
  $region22: #{_clusterer_forward_impl.1} parent=0
    _
  %s6 = ssub.s32 1, %s4
  %s7 = scalar_select 0, %s6, %s4
  $region1: #{_clusterer_forward_impl.1} parent=0
    #allocation2 [shape = 'u8[1024]{0}', space=vmem, size = 0x400, scoped, tag = 'output window, operand 0, single buffered']
    #allocation3 [shape = 's32[1]{0}', space=sflag, size = 0x4, scoped, tag = 'scoped memory for _clusterer_forward_impl.1']
    %8 = vsyncpa [#allocation3], 0
    // Predicated region
    $region2: #{_clusterer_forward_impl.1} parent=1 // pred_check
      _
    $region3: #{_clusterer_forward_impl.1} parent=1 // pred_check_branch
      %10 = sbr.rel (0) target = $region5
    $region4: #{_clusterer_forward_impl.1} parent=1 // pred_region
      _
    $region5: #{_clusterer_forward_impl.1} parent=1 // pred_fallthru
      _
    // Predicated region
    $region6: #{_clusterer_forward_impl.1} parent=1 // pred_check
      _
    $region7: #{_clusterer_forward_impl.1} parent=1 // pred_check_branch
      %12 = sbr.rel (0) target = $region9
    $region8: #{_clusterer_forward_impl.1} parent=1 // pred_region
      _
    $region9: #{_clusterer_forward_impl.1} parent=1 // pred_fallthru
      _
    // Predicated region
    $region10: #{_clusterer_forward_impl.1} parent=1 // pred_check
      _
    $region11: #{_clusterer_forward_impl.1} parent=1 // pred_check_branch
      %14 = sbr.rel (0) target = $region13
    $region12: #{_clusterer_forward_impl.1} parent=1 // pred_region
      _
    $region13: #{_clusterer_forward_impl.1} parent=1 // pred_fallthru
      _
    %v15 = vld [vmem:[%s0] sm:$0x3]
    %v16 = vld [vmem:[%s1] sm:$0xff]
    %v17 = vld [vmem:[%s1 + $0x8] sm:$0xff]
    %v18 = vld [vmem:[%s1 + $0x10] sm:$0xff]
    %v19 = vld [vmem:[%s1 + $0x18] sm:$0xff]
    %v20 = vld [vmem:[%s2] sm:$0x1]
    %v21 = vmul.f32 %v15, %v15
    %vm22 = vcmask 254976
    %v23 = vsel %vm22, %v21, 0.0
    %24 = vadd.xlane.f32.xlu0 %v23
    %v25 = vpop.xlane.xlu0 %24
    %vm26 = vcmask 261120
    %v28 = vsel %vm26, %v15, 0
    %30 = vmatprep.subr.mxu0 0.0
    %31 = vmatpush1.msra.mxu0 %v16
    %32 = vmatprep.subr.mxu0 0.0
    %33 = vmatpush1.msra.mxu0 %v17
    %34 = vmatprep.subr.mxu0 0.0
    %35 = vmatpush1.msra.mxu0 %v18
    %36 = vmatprep.subr.mxu0 0.0
    %37 = vmatpush1.msra.mxu0 %v19
    %38 = vmatprep.subr.mxu0 0.0
    %39 = vmatpush1.msra.mxu0 0.0
    %40 = vmatprep.subr.mxu0 0.0
    %41 = vmatpush1.msra.mxu0 0.0
    %42 = vmatprep.subr.mxu0 0.0
    %43 = vmatpush1.msra.mxu0 0.0
    %44 = vmatprep.subr.mxu0 0.0
    %45 = vmatpush1.msra.mxu0 0.0
    %46 = vmatprep.subr.mxu0 0.0
    %47 = vmatpush1.msra.mxu0 0.0
    %48 = vmatprep.subr.mxu0 0.0
    %49 = vmatpush1.msra.mxu0 0.0
    %50 = vmatprep.subr.mxu0 0.0
    %51 = vmatpush1.msra.mxu0 0.0
    %52 = vmatprep.subr.mxu0 0.0
    %53 = vmatpush1.msra.mxu0 0.0
    %54 = vmatprep.subr.mxu0 0.0
    %55 = vmatpush1.msra.mxu0 0.0
    %56 = vmatprep.subr.mxu0 0.0
    %57 = vmatpush1.msra.mxu0 0.0
    %58 = vmatprep.subr.mxu0 0.0
    %59 = vmatpush1.msra.mxu0 0.0
    %60 = vmatprep.subr.mxu0 0.0
    %61 = vmatpush1.msra.mxu0 0.0
    %62 = vmatprep.subr.mxu0 0.0
    %63 = vmatpush1.msra.mxu0 0.0
    %64 = vmatprep.subr.mxu0 0.0
    %65 = vmatpush1.msra.mxu0 0.0
    %66 = vmatprep.subr.mxu0 0.0
    %67 = vmatpush1.msra.mxu0 0.0
    %68 = vmatprep.subr.mxu0 0.0
    %69 = vmatpush1.msra.mxu0 0.0
    %70 = vmatprep.subr.mxu0 0.0
    %71 = vmatpush1.msra.mxu0 0.0
    %72 = vmatprep.subr.mxu0 0.0
    %73 = vmatpush1.msra.mxu0 0.0
    %74 = vmatprep.subr.mxu0 0.0
    %75 = vmatpush1.msra.mxu0 0.0
    %76 = vmatprep.subr.mxu0 0.0
    %77 = vmatpush1.msra.mxu0 0.0
    %78 = vmatprep.subr.mxu0 0.0
    %79 = vmatpush1.msra.mxu0 0.0
    %80 = vmatprep.subr.mxu0 0.0
    %81 = vmatpush1.msra.mxu0 0.0
    %82 = vmatprep.subr.mxu0 0.0
    %83 = vmatpush1.msra.mxu0 0.0
    %84 = vmatprep.subr.mxu0 0.0
    %85 = vmatpush1.msra.mxu0 0.0
    %86 = vmatprep.subr.mxu0 0.0
    %87 = vmatpush1.msra.mxu0 0.0
    %88 = vmatprep.subr.mxu0 0.0
    %89 = vmatpush1.msra.mxu0 0.0
    %90 = vmatprep.subr.mxu0 0.0
    %91 = vmatpush1.msra.mxu0 0.0
    %92 = vmatprep.subr.mxu0 0.0
    %93 = vmatpush1.msra.mxu0 0.0
    %94 = vmatprep.mubr.f32.mxu0 0.0
    %95 = vmatmul.mubr.f32.gmra.mrb[0].mxu0 %v28
    %v96 = vpop.f32.mrb[0].mxu0
    %v97 = vadd.f32 0.0, %v96
    %v98 = vpop.f32.mrb[0].mxu0
    %99 = vdwg.mxu0
    %v101 = vlaneseq
    %v102 = vshrl.u32 %v101, 7
    %v103 = vsub.s32 0, %v102
    %v104 = vrot.slane %v20, %v103
    %v106 = vadd.f32 %v25, %v104
    %v107 = vmul.f32 %v97, 2.0
    %v108 = vsub.f32 %v106, %v107
    %v109 = vmax.f32 %v108, 0.0
    %v110 = vadd.f32 %v109, 1.0
    %v111 = vrcp.pop %v110
    %v112 = vmul.f32 1.0, %v111
    %v113 = vlaneseq
    %v114 = vand.u32 %v113, 127
    %vm115 = vcmp.lt.s32.totalorder %v114, 10
    %v116 = vsel %vm115, %v112, 0.0
    %vm117 = vcmask 1041408
    %v118 = vsel %vm117, %v116, 0.0
    %119 = vadd.xlane.f32.xlu0 %v118
    %v120 = vpop.xlane.xlu0 %119
    %v121 = vrcp.pop %v120
    %v122 = vmul.f32 %v116, %v121
    %123 = vst [vmem:[#allocation2] sm:$0x3] %v122
    // Predicated region
    $region14: #{_clusterer_forward_impl.1} parent=1 // pred_check
      _
    $region15: #{_clusterer_forward_impl.1} parent=1 // pred_check_branch
      %125 = sbr.rel (0) target = $region17
    $region16: #{_clusterer_forward_impl.1} parent=1 // pred_region
      %s127 = ssub.s32 32, 32
      %128 = vsyncadd [#allocation3], %s127
      %s130 = sshll.u32 [#allocation2], 4
      %s131 = int_to_ptr.vmem [resolvable:$true] %s130
      %133 = dma.vmem_to_hbm [thread:$0]  %s131, 32, %s3, [#allocation3]
    $region17: #{_clusterer_forward_impl.1} parent=1 // pred_fallthru
      _
    // Predicated region
    $region18: #{_clusterer_forward_impl.1} parent=1 // pred_check
      _
    $region19: #{_clusterer_forward_impl.1} parent=1 // pred_check_branch
      %135 = sbr.rel (0) target = $region21
    $region20: #{_clusterer_forward_impl.1} parent=1 // pred_region
      %136 = dma.done [#allocation3], 32
    $region21: #{_clusterer_forward_impl.1} parent=1 // pred_fallthru
      _
    %137 = vsyncpa [#allocation3], 1

</llo_original>
